<compile_context>
chip_gen: v5e
topology: v5e:2x2
jax: 0.10.0
libtpu: 0.0.40
codegen_flags: <defaults>
</compile_context>

<pallas_src>
import functools

import jax
import jax.numpy as jnp
from jax.experimental import pallas as pl
from jax.experimental.pallas import tpu as pltpu


def _round_up(x, m):
    return (x + m - 1) // m * m


def _rnn_rows_kernel(x_ref, wi0_ref, b0_ref, wir_ref, br_ref, o_ref, *,
                     num_rest, unroll_layers):
    """One grid step == one tile of independent rows (rows = batch * seq)."""
    cdt = wi0_ref.dtype  # MXU operand dtype (f32 default, optionally bf16)
    # layer 0: tanh(x @ Wi0 + (bi0 + bh0))  — zero-hidden matmul folded into bias
    h = jnp.tanh(
        jnp.dot(x_ref[...].astype(cdt), wi0_ref[...],
                preferred_element_type=jnp.float32) + b0_ref[...])
    if num_rest > 0:
        def layer(j, h):
            return jnp.tanh(
                jnp.dot(h.astype(cdt), wir_ref[j],
                        preferred_element_type=jnp.float32) + br_ref[j])
        if unroll_layers:
            for j in range(num_rest):      # small L: static unroll
                h = layer(j, h)
        else:                              # large L: bound vreg live ranges
            h = jax.lax.fori_loop(0, num_rest, layer, h)
    o_ref[...] = h.astype(o_ref.dtype)


@functools.partial(jax.jit, static_argnames=("single_buffer_weights", "mxu_dtype"))
def rnn_forward(x, params, single_buffer_weights=True, mxu_dtype=jnp.float32):
    """x: (batch, seq, input_size) f32.  Returns (log_probs (B,O), outputs (B,S,H))."""
    wi0, bi0 = params["wi0"], params["bi0"]          # (D_in, H), (1, H)
    wir, bir = params["wir"], params["bir"]          # (L-1, H, H), (L-1, 1, H)
    bh = params["bh"]                                # (L, 1, H)  (wh unused: h == 0)
    wo, bo = params["wo"], params["bo"]              # (H, O), (1, O)

    batch, seq, d_in = x.shape
    hidden = wi0.shape[-1]
    l_rest = wir.shape[0]                            # num_layers - 1

    # fold the zero-hidden Linear into the input-side biases (bit-exact)
    b0_eff = bi0 + bh[0]

    # pad hidden lanes to 128 only when needed (lane-dense output stores)
    hp = _round_up(hidden, 128)
    if hp != hidden:
        wi0_p = jnp.pad(wi0, ((0, 0), (0, hp - hidden)))
        b0_p = jnp.pad(b0_eff, ((0, 0), (0, hp - hidden)))
    else:
        wi0_p, b0_p = wi0, b0_eff
    if l_rest > 0:
        br_eff = bir + bh[1:]
        if hp != hidden:
            wir_p = jnp.pad(wir, ((0, 0), (0, hp - hidden), (0, hp - hidden)))
            br_p = jnp.pad(br_eff, ((0, 0), (0, 0), (0, hp - hidden)))
        else:
            wir_p, br_p = wir, br_eff
    else:
        wir_p = jnp.zeros((1, hp, hp), jnp.float32)  # dummy, never read
        br_p = jnp.zeros((1, 1, hp), jnp.float32)
    l_eff = wir_p.shape[0]

    wi0_p = wi0_p.astype(mxu_dtype)
    wir_p = wir_p.astype(mxu_dtype)

    # no recurrence -> fold time into the matmul M dimension; x stays in its
    # native (B, S, D) layout so this reshape is free (no transpose/pad pass)
    rows = batch * seq
    x_rows = x.reshape(rows, d_in)

    # row tile: big tiles (fewer grid steps), but keep >= 2 parallel steps when
    # rows allow so both v7x TensorCores get work; ragged last tile is fine.
    tm = min(512, _round_up(rows, 8))
    if rows >= 16 and pl.cdiv(rows, tm) < 2:
        tm = _round_up(pl.cdiv(rows, 2), 8)
    grid = (pl.cdiv(rows, tm),)

    w_bytes = jnp.dtype(mxu_dtype).itemsize
    w_bufs = 1 if single_buffer_weights else 2
    vmem_need = (2 * tm * d_in * 4 + 2 * tm * hp * 4            # x / out tiles (double-buffered)
                 + w_bufs * (d_in * hp * w_bytes + hp * 4
                             + l_eff * hp * hp * w_bytes + l_eff * hp * 4))
    vmem_limit = int(min(max(2 * vmem_need, 16 * 1024 * 1024), 128 * 1024 * 1024))

    cost = pl.CostEstimate(
        flops=2 * rows * (d_in + l_rest * hp) * hp,
        transcendentals=rows * hp * (1 + l_rest),
        bytes_accessed=(rows * d_in * 4 + rows * hp * 4
                        + d_in * hp * w_bytes + l_eff * hp * hp * w_bytes
                        + (1 + l_eff) * hp * 4))

    def w_spec(shape, index_map):
        # grid-invariant operands: single-buffering halves their VMEM residency
        if single_buffer_weights:
            return pl.BlockSpec(shape, index_map, pipeline_mode=pl.Buffered(1))
        return pl.BlockSpec(shape, index_map)

    kernel = functools.partial(_rnn_rows_kernel, num_rest=l_rest,
                               unroll_layers=l_rest <= 4)

    h_rows = pl.pallas_call(
        kernel,
        out_shape=jax.ShapeDtypeStruct((rows, hp), jnp.float32),
        grid_spec=pltpu.PrefetchScalarGridSpec(
            num_scalar_prefetch=0,
            grid=grid,
            in_specs=[
                pl.BlockSpec((tm, d_in), lambda i: (i, 0)),
                w_spec((d_in, hp), lambda i: (0, 0)),
                w_spec((1, hp), lambda i: (0, 0)),
                w_spec((l_eff, hp, hp), lambda i: (0, 0, 0)),
                w_spec((l_eff, 1, hp), lambda i: (0, 0, 0)),
            ],
            out_specs=pl.BlockSpec((tm, hp), lambda i: (i, 0)),
        ),
        compiler_params=pltpu.CompilerParams(
            dimension_semantics=("parallel",),
            vmem_limit_bytes=vmem_limit),
        cost_estimate=cost,
    )(x_rows, wi0_p, b0_p, wir_p, br_p)

    out3 = h_rows.reshape(batch, seq, hp)
    outputs = out3[..., :hidden]                     # (B, S, H) last-layer hidden per step
    # classification head at the last timestep (tiny (B,O); plain JAX by design):
    # o_fc + LogSoftmax(dim=1)  (assumed return_logits=False path)
    last = out3[:, -1, :hidden]                      # (B, H)
    logits = last @ wo + bo
    log_probs = jax.nn.log_softmax(logits, axis=1)
    return log_probs, outputs


def init_params(key, input_size, hidden_size, num_layers, output_size):
    """Deterministic params mimicking nn.Linear's U(-1/sqrt(fan_in), 1/sqrt(fan_in))."""
    def linear(key, fan_in, fan_out):
        k_w, k_b = jax.random.split(key)
        bound = 1.0 / jnp.sqrt(fan_in)
        w = jax.random.uniform(k_w, (fan_in, fan_out), jnp.float32, -bound, bound)
        b = jax.random.uniform(k_b, (1, fan_out), jnp.float32, -bound, bound)
        return w, b

    keys = jax.random.split(key, 2 * num_layers + 2)
    wi0, bi0 = linear(keys[0], input_size, hidden_size)
    wir_list, bir_list, wh_list, bh_list = [], [], [], []
    wh0, bh0 = linear(keys[1], hidden_size, hidden_size)
    wh_list.append(wh0)
    bh_list.append(bh0)
    for i in range(1, num_layers):
        wi, bi = linear(keys[2 * i], hidden_size, hidden_size)
        wh, bh = linear(keys[2 * i + 1], hidden_size, hidden_size)
        wir_list.append(wi)
        bir_list.append(bi)
        wh_list.append(wh)
        bh_list.append(bh)
    wo, bo = linear(keys[-1], hidden_size, output_size)
    return {
        "wi0": wi0, "bi0": bi0,
        "wir": jnp.stack(wir_list), "bir": jnp.stack(bir_list),
        "wh": jnp.stack(wh_list), "bh": jnp.stack(bh_list),
        "wo": wo, "bo": bo,
    }


def rnn_forward_ref(x, params):
    """Pure-JAX reference mirroring the PyTorch forward (for verification)."""
    x_tm = jnp.transpose(x, (1, 0, 2))               # (S, B, D) == permute(1,0,2)
    num_layers = params["wh"].shape[0]
    hidden = params["wh"].shape[-1]
    h_zero = jnp.zeros((1, hidden), jnp.float32)     # hidden state is never updated
    outs = []
    for t in range(x_tm.shape[0]):
        h = jnp.tanh(x_tm[t] @ params["wi0"] + params["bi0"]
                     + h_zero @ params["wh"][0] + params["bh"][0])
        for j in range(1, num_layers):
            h = jnp.tanh(h @ params["wir"][j - 1] + params["bir"][j - 1]
                         + h_zero @ params["wh"][j] + params["bh"][j])
        outs.append(h)
    seq = jnp.stack(outs)                            # (S, B, H) == self.outputs
    logits = seq[-1] @ params["wo"] + params["bo"]
    return jax.nn.log_softmax(logits, axis=1), seq


if __name__ == "__main__":
    batch, seq, input_size, hidden_size, num_layers, output_size = 4, 8, 16, 32, 2, 10

    key = jax.random.PRNGKey(0)
    k_x, k_p = jax.random.split(key)
    x = jax.random.normal(k_x, (batch, seq, input_size), jnp.float32)
    params = init_params(k_p, input_size, hidden_size, num_layers, output_size)

    try:
        log_probs, outputs = rnn_forward(x, params, single_buffer_weights=True)
        jax.block_until_ready((log_probs, outputs))
    except Exception:
        # fallback if this JAX build rejects pipeline_mode=pl.Buffered(1)
        log_probs, outputs = rnn_forward(x, params, single_buffer_weights=False)
        jax.block_until_ready((log_probs, outputs))

    ref_lp, ref_seq = rnn_forward_ref(x, params)
    ref_outputs = jnp.transpose(ref_seq, (1, 0, 2))  # (B, S, H) to match kernel layout

    # Tolerance covers the case where the in-kernel f32 matmul and the XLA
    # reference matmul pick different MXU f32 precision paths (exact vs bf16
    # passes); structural errors would be orders of magnitude larger.
    assert jnp.allclose(log_probs, ref_lp, atol=5e-3, rtol=5e-3), \
        float(jnp.max(jnp.abs(log_probs - ref_lp)))
    assert jnp.allclose(outputs, ref_outputs, atol=5e-3, rtol=5e-3), \
        float(jnp.max(jnp.abs(outputs - ref_outputs)))

    print("KERNEL_OK")
</pallas_src>

<mosaic_0001>
module attributes {stable_mosaic.version = 11 : i64} {
  func.func @_rnn_rows_kernel(%arg0: i32, %arg1: memref<16x16xf32, #tpu.memory_space<vmem>>, %arg2: memref<16x128xf32, #tpu.memory_space<vmem>>, %arg3: memref<1x128xf32, #tpu.memory_space<vmem>>, %arg4: memref<1x128x128xf32, #tpu.memory_space<vmem>>, %arg5: memref<1x1x128xf32, #tpu.memory_space<vmem>>, %arg6: memref<16x128xf32, #tpu.memory_space<vmem>>) attributes {dimension_semantics = [#tpu.dimension_semantics<parallel>], iteration_bounds = array<i64: 2>, scalar_prefetch = 0 : i64, scratch_operands = 0 : i64, tpu.core_type = #tpu.core_type<tc>, window_params = [{transform_indices = @transform_0, window_bounds = array<i64: 16, 16>}, {pipeline_mode = #tpu.pipeline_mode<synchronous>, transform_indices = @transform_1, window_bounds = array<i64: 16, 128>}, {pipeline_mode = #tpu.pipeline_mode<synchronous>, transform_indices = @transform_2, window_bounds = array<i64: 1, 128>}, {pipeline_mode = #tpu.pipeline_mode<synchronous>, transform_indices = @transform_3, window_bounds = array<i64: 1, 128, 128>}, {pipeline_mode = #tpu.pipeline_mode<synchronous>, transform_indices = @transform_4, window_bounds = array<i64: 1, 1, 128>}, {transform_indices = @transform_5, window_bounds = array<i64: 16, 128>}]} {
    %c0 = arith.constant 0 : index
    %c0_0 = arith.constant 0 : index
    %0 = vector.load %arg1[%c0, %c0_0] : memref<16x16xf32, #tpu.memory_space<vmem>>, vector<16x16xf32>
    %c0_1 = arith.constant 0 : index
    %c0_2 = arith.constant 0 : index
    %1 = vector.load %arg2[%c0_1, %c0_2] : memref<16x128xf32, #tpu.memory_space<vmem>>, vector<16x128xf32>
    %cst = arith.constant dense<0.000000e+00> : vector<16x128xf32>
    %2 = tpu.matmul %0, %1, %cst {dimension_numbers = #tpu.dot_dimension_numbers<[1], [0], [0], [1], [0, 0, 1, 1], [], []>} : vector<16x16xf32>, vector<16x128xf32>, vector<16x128xf32> -> vector<16x128xf32>
    %c0_3 = arith.constant 0 : index
    %c0_4 = arith.constant 0 : index
    %3 = vector.load %arg3[%c0_3, %c0_4] : memref<1x128xf32, #tpu.memory_space<vmem>>, vector<1x128xf32>
    %4 = vector.broadcast %3 : vector<1x128xf32> to vector<16x128xf32>
    %5 = arith.addf %2, %4 : vector<16x128xf32>
    %6 = math.tanh %5 : vector<16x128xf32>
    %c0_5 = arith.constant 0 : index
    %c0_6 = arith.constant 0 : index
    %c0_7 = arith.constant 0 : index
    %7 = vector.load %arg4[%c0_5, %c0_6, %c0_7] : memref<1x128x128xf32, #tpu.memory_space<vmem>>, vector<1x128x128xf32>
    %8 = vector.shape_cast %7 : vector<1x128x128xf32> to vector<128x128xf32>
    %cst_8 = arith.constant dense<0.000000e+00> : vector<16x128xf32>
    %9 = tpu.matmul %6, %8, %cst_8 {dimension_numbers = #tpu.dot_dimension_numbers<[1], [0], [0], [1], [0, 0, 1, 1], [], []>} : vector<16x128xf32>, vector<128x128xf32>, vector<16x128xf32> -> vector<16x128xf32>
    %c0_9 = arith.constant 0 : index
    %c0_10 = arith.constant 0 : index
    %c0_11 = arith.constant 0 : index
    %10 = vector.load %arg5[%c0_9, %c0_10, %c0_11] : memref<1x1x128xf32, #tpu.memory_space<vmem>>, vector<1x1x128xf32>
    %11 = vector.shape_cast %10 : vector<1x1x128xf32> to vector<1x128xf32>
    %12 = vector.broadcast %11 : vector<1x128xf32> to vector<16x128xf32>
    %13 = arith.addf %9, %12 : vector<16x128xf32>
    %14 = math.tanh %13 : vector<16x128xf32>
    %c0_12 = arith.constant 0 : index
    %c0_13 = arith.constant 0 : index
    %15 = vector.load %arg6[%c0_12, %c0_13] : memref<16x128xf32, #tpu.memory_space<vmem>>, vector<16x128xf32>
    tpu.vector_store %arg6[%c0_12, %c0_13], %14 {strides = array<i32>} : memref<16x128xf32, #tpu.memory_space<vmem>>, vector<16x128xf32>,
    return
  }
  func.func @transform_0(%arg0: i32) -> (i32, i32) {
    %c0_i32 = arith.constant 0 : i32
    %c0_i32_0 = arith.constant 0 : i32
    return %arg0, %c0_i32 : i32, i32
  }
  func.func @transform_1(%arg0: i32) -> (i32, i32) {
    %c0_i32 = arith.constant 0 : i32
    %c0_i32_0 = arith.constant 0 : i32
    %c0_i32_1 = arith.constant 0 : i32
    return %c0_i32, %c0_i32_0 : i32, i32
  }
  func.func @transform_2(%arg0: i32) -> (i32, i32) {
    %c0_i32 = arith.constant 0 : i32
    %c0_i32_0 = arith.constant 0 : i32
    %c0_i32_1 = arith.constant 0 : i32
    return %c0_i32, %c0_i32_0 : i32, i32
  }
  func.func @transform_3(%arg0: i32) -> (i32, i32, i32) {
    %c0_i32 = arith.constant 0 : i32
    %c0_i32_0 = arith.constant 0 : i32
    %c0_i32_1 = arith.constant 0 : i32
    %c0_i32_2 = arith.constant 0 : i32
    return %c0_i32, %c0_i32_0, %c0_i32_1 : i32, i32, i32
  }
  func.func @transform_4(%arg0: i32) -> (i32, i32, i32) {
    %c0_i32 = arith.constant 0 : i32
    %c0_i32_0 = arith.constant 0 : i32
    %c0_i32_1 = arith.constant 0 : i32
    %c0_i32_2 = arith.constant 0 : i32
    return %c0_i32, %c0_i32_0, %c0_i32_1 : i32, i32, i32
  }
  func.func @transform_5(%arg0: i32) -> (i32, i32) {
    %c0_i32 = arith.constant 0 : i32
    %c0_i32_0 = arith.constant 0 : i32
    return %arg0, %c0_i32 : i32, i32
  }
}

module attributes {stable_mosaic.version = 11 : i64} {
  func.func @_rnn_rows_kernel(%arg0: i32, %arg1: memref<16x16xf32, #tpu.memory_space<vmem>>, %arg2: memref<16x128xf32, #tpu.memory_space<vmem>>, %arg3: memref<1x128xf32, #tpu.memory_space<vmem>>, %arg4: memref<1x128x128xf32, #tpu.memory_space<vmem>>, %arg5: memref<1x1x128xf32, #tpu.memory_space<vmem>>, %arg6: memref<16x128xf32, #tpu.memory_space<vmem>>) attributes {dimension_semantics = [#tpu.dimension_semantics<parallel>], iteration_bounds = array<i64: 2>, scalar_prefetch = 0 : i64, scratch_operands = 0 : i64, tpu.core_type = #tpu.core_type<tc>, window_params = [{transform_indices = @transform_0, window_bounds = array<i64: 16, 16>}, {pipeline_mode = #tpu.pipeline_mode<synchronous>, transform_indices = @transform_1, window_bounds = array<i64: 16, 128>}, {pipeline_mode = #tpu.pipeline_mode<synchronous>, transform_indices = @transform_2, window_bounds = array<i64: 1, 128>}, {pipeline_mode = #tpu.pipeline_mode<synchronous>, transform_indices = @transform_3, window_bounds = array<i64: 1, 128, 128>}, {pipeline_mode = #tpu.pipeline_mode<synchronous>, transform_indices = @transform_4, window_bounds = array<i64: 1, 1, 128>}, {transform_indices = @transform_5, window_bounds = array<i64: 16, 128>}]} {
    %c0 = arith.constant 0 : index
    %c0_0 = arith.constant 0 : index
    %0 = vector.load %arg1[%c0, %c0_0] : memref<16x16xf32, #tpu.memory_space<vmem>>, vector<16x16xf32>
    %c0_1 = arith.constant 0 : index
    %c0_2 = arith.constant 0 : index
    %1 = vector.load %arg2[%c0_1, %c0_2] : memref<16x128xf32, #tpu.memory_space<vmem>>, vector<16x128xf32>
    %cst = arith.constant dense<0.000000e+00> : vector<16x128xf32>
    %2 = tpu.matmul %0, %1, %cst {dimension_numbers = #tpu.dot_dimension_numbers<[1], [0], [0], [1], [0, 0, 1, 1], [], []>} : vector<16x16xf32>, vector<16x128xf32>, vector<16x128xf32> -> vector<16x128xf32>
    %c0_3 = arith.constant 0 : index
    %c0_4 = arith.constant 0 : index
    %3 = vector.load %arg3[%c0_3, %c0_4] : memref<1x128xf32, #tpu.memory_space<vmem>>, vector<1x128xf32>
    %4 = vector.broadcast %3 : vector<1x128xf32> to vector<16x128xf32>
    %5 = arith.addf %2, %4 : vector<16x128xf32>
    %6 = math.tanh %5 : vector<16x128xf32>
    %c0_5 = arith.constant 0 : index
    %c0_6 = arith.constant 0 : index
    %c0_7 = arith.constant 0 : index
    %7 = vector.load %arg4[%c0_5, %c0_6, %c0_7] : memref<1x128x128xf32, #tpu.memory_space<vmem>>, vector<1x128x128xf32>
    %8 = vector.shape_cast %7 : vector<1x128x128xf32> to vector<128x128xf32>
    %cst_8 = arith.constant dense<0.000000e+00> : vector<16x128xf32>
    %9 = tpu.matmul %6, %8, %cst_8 {dimension_numbers = #tpu.dot_dimension_numbers<[1], [0], [0], [1], [0, 0, 1, 1], [], []>} : vector<16x128xf32>, vector<128x128xf32>, vector<16x128xf32> -> vector<16x128xf32>
    %c0_9 = arith.constant 0 : index
    %c0_10 = arith.constant 0 : index
    %c0_11 = arith.constant 0 : index
    %10 = vector.load %arg5[%c0_9, %c0_10, %c0_11] : memref<1x1x128xf32, #tpu.memory_space<vmem>>, vector<1x1x128xf32>
    %11 = vector.shape_cast %10 : vector<1x1x128xf32> to vector<1x128xf32>
    %12 = vector.broadcast %11 : vector<1x128xf32> to vector<16x128xf32>
    %13 = arith.addf %9, %12 : vector<16x128xf32>
    %14 = math.tanh %13 : vector<16x128xf32>
    %c0_12 = arith.constant 0 : index
    %c0_13 = arith.constant 0 : index
    %15 = vector.load %arg6[%c0_12, %c0_13] : memref<16x128xf32, #tpu.memory_space<vmem>>, vector<16x128xf32>
    tpu.vector_store %arg6[%c0_12, %c0_13], %14 {strides = array<i32>} : memref<16x128xf32, #tpu.memory_space<vmem>>, vector<16x128xf32>,
    return
  }
  func.func @transform_0(%arg0: i32) -> (i32, i32) {
    %c0_i32 = arith.constant 0 : i32
    %c0_i32_0 = arith.constant 0 : i32
    return %arg0, %c0_i32 : i32, i32
  }
  func.func @transform_1(%arg0: i32) -> (i32, i32) {
    %c0_i32 = arith.constant 0 : i32
    %c0_i32_0 = arith.constant 0 : i32
    %c0_i32_1 = arith.constant 0 : i32
    return %c0_i32, %c0_i32_0 : i32, i32
  }
  func.func @transform_2(%arg0: i32) -> (i32, i32) {
    %c0_i32 = arith.constant 0 : i32
    %c0_i32_0 = arith.constant 0 : i32
    %c0_i32_1 = arith.constant 0 : i32
    return %c0_i32, %c0_i32_0 : i32, i32
  }
  func.func @transform_3(%arg0: i32) -> (i32, i32, i32) {
    %c0_i32 = arith.constant 0 : i32
    %c0_i32_0 = arith.constant 0 : i32
    %c0_i32_1 = arith.constant 0 : i32
    %c0_i32_2 = arith.constant 0 : i32
    return %c0_i32, %c0_i32_0, %c0_i32_1 : i32, i32, i32
  }
  func.func @transform_4(%arg0: i32) -> (i32, i32, i32) {
    %c0_i32 = arith.constant 0 : i32
    %c0_i32_0 = arith.constant 0 : i32
    %c0_i32_1 = arith.constant 0 : i32
    %c0_i32_2 = arith.constant 0 : i32
    return %c0_i32, %c0_i32_0, %c0_i32_1 : i32, i32, i32
  }
  func.func @transform_5(%arg0: i32) -> (i32, i32) {
    %c0_i32 = arith.constant 0 : i32
    %c0_i32_0 = arith.constant 0 : i32
    return %arg0, %c0_i32 : i32, i32
  }
}

</mosaic_0001>

<llo_original>
// kernel: rnn_forward.1
$region0: #{rnn_forward.1}
  #allocation0 [shape = 'u32[]', space=smem, size = 0x4, offset = 0x4, fixed_abs, tag = 'smem constant byte address 0x4 - core index']
  #allocation1 [shape = 'u32[72,128]{1,0:T(1,128)}', space=vmem, size = 0x9000, scoped, tag = 'internal scratch']
  %s0 = inlined_call_operand.vmem [shape: f32[32,16], index: 0, kind: input, shape index: {}]
  %s1 = inlined_call_operand.vmem [shape: f32[16,128], index: 1, kind: input, shape index: {}]
  %s2 = inlined_call_operand.vmem [shape: f32[1,128], index: 2, kind: input, shape index: {}]
  %s3 = inlined_call_operand.vmem [shape: f32[1,128,128], index: 3, kind: input, shape index: {}]
  %s4 = inlined_call_operand.vmem [shape: f32[1,1,128], index: 4, kind: input, shape index: {}]
  %s5 = inlined_call_operand.vmem [shape: f32[32,128], index: 5, kind: output, shape index: {}]
  %s6 = sld [smem:[#allocation0]]
  $region53: #{rnn_forward.1} parent=0
    _
  %s8 = ssub.s32 1, %s6
  %s9 = scalar_select 0, %s8, %s6
  loop: start=0, step=1, limit=4
  $region2: #{rnn_forward.1} parent=0 // loop_pre_header
    _
  $region3: #{rnn_forward.1} parent=0 // loop_header
    %s11 = sphi 0, %s15
    %p12 = scmp.ge.s32.totalorder %s11, 4
    %s21 = sphi 0, %s23
    %s24 = sphi 0, %s21
    %s25 = sphi 0, %s24
    %s41 = sphi 0, %s25
    %s45 = sphi 0, %s45
    %s47 = sphi 0, %s45
    %s48 = sphi 0, %s47
    %s62 = sphi 0, %s48
    %s66 = sphi 0, %s66
    %s68 = sphi 0, %s66
    %s69 = sphi 0, %s68
    %s83 = sphi 0, %s69
    %s87 = sphi 0, %s87
    %s89 = sphi 0, %s87
    %s90 = sphi 0, %s89
    %s104 = sphi 0, %s90
    %s108 = sphi 0, %s108
    %s110 = sphi 0, %s108
    %s111 = sphi 0, %s110
    %s125 = sphi 0, %s111
    %s131 = sphi 0, %s133
    %s134 = sphi 0, %s131
    %s135 = sphi 0, %s134
    %s151 = sphi 0, %s135
  $region4: #{rnn_forward.1} parent=0 // loop_header_branch
    %14 = sbr.rel (%p12) target = $region8
  $region5: #{rnn_forward.1} parent=0 // loop_body
    %s16 = ssub.s32 %s11, 1
    %s17 = ssub.s32 %s11, 2
    %s18 = sadd.s32 %s11, 1
    %s19 = ssub.s32 %s11, %s18
    %p20 = scmp.eq.s32.totalorder %s19, 0
    %s22 = sadd.s32 %s21, 1
    %s23 = scalar_select %p20, %s21, %s22
    %p26 = pneg %p20
    %p27 = scmp.eq.s32.totalorder %s11, 1
    %p28 = por %p26, %p27
    %p29 = scmp.ne.s32.totalorder %s21, %s24
    %p30 = scmp.eq.s32.totalorder %s11, 0
    %p31 = por %p29, %p30
    %p32 = scmp.ne.s32.totalorder %s21, %s24
    %p33 = scmp.eq.s32.totalorder %s16, 1
    %p34 = por %p32, %p33
    %p35 = scmp.ne.s32.totalorder %s24, %s25
    %p36 = scmp.eq.s32.totalorder %s16, 0
    %p37 = por %p35, %p36
    %p38 = scmp.ne.s32.totalorder %s24, %s25
    %p39 = scmp.eq.s32.totalorder %s17, 1
    %p40 = por %p38, %p39
    %p42 = scmp.ne.s32.totalorder %s25, %s41
    %p43 = scmp.eq.s32.totalorder %s17, 0
    %p44 = por %p42, %p43
    %s46 = sadd.s32 %s45, 1
    %p49 = scmp.eq.s32.totalorder %s11, 1
    %p50 = scmp.ne.s32.totalorder %s45, %s47
    %p51 = scmp.eq.s32.totalorder %s11, 0
    %p52 = por %p50, %p51
    %p53 = scmp.ne.s32.totalorder %s45, %s47
    %p54 = scmp.eq.s32.totalorder %s16, 1
    %p55 = por %p53, %p54
    %p56 = scmp.ne.s32.totalorder %s47, %s48
    %p57 = scmp.eq.s32.totalorder %s16, 0
    %p58 = por %p56, %p57
    %p59 = scmp.ne.s32.totalorder %s47, %s48
    %p60 = scmp.eq.s32.totalorder %s17, 1
    %p61 = por %p59, %p60
    %p63 = scmp.ne.s32.totalorder %s48, %s62
    %p64 = scmp.eq.s32.totalorder %s17, 0
    %p65 = por %p63, %p64
    %s67 = sadd.s32 %s66, 1
    %p70 = scmp.eq.s32.totalorder %s11, 1
    %p71 = scmp.ne.s32.totalorder %s66, %s68
    %p72 = scmp.eq.s32.totalorder %s11, 0
    %p73 = por %p71, %p72
    %p74 = scmp.ne.s32.totalorder %s66, %s68
    %p75 = scmp.eq.s32.totalorder %s16, 1
    %p76 = por %p74, %p75
    %p77 = scmp.ne.s32.totalorder %s68, %s69
    %p78 = scmp.eq.s32.totalorder %s16, 0
    %p79 = por %p77, %p78
    %p80 = scmp.ne.s32.totalorder %s68, %s69
    %p81 = scmp.eq.s32.totalorder %s17, 1
    %p82 = por %p80, %p81
    %p84 = scmp.ne.s32.totalorder %s69, %s83
    %p85 = scmp.eq.s32.totalorder %s17, 0
    %p86 = por %p84, %p85
    %s88 = sadd.s32 %s87, 1
    %p91 = scmp.eq.s32.totalorder %s11, 1
    %p92 = scmp.ne.s32.totalorder %s87, %s89
    %p93 = scmp.eq.s32.totalorder %s11, 0
    %p94 = por %p92, %p93
    %p95 = scmp.ne.s32.totalorder %s87, %s89
    %p96 = scmp.eq.s32.totalorder %s16, 1
    %p97 = por %p95, %p96
    %p98 = scmp.ne.s32.totalorder %s89, %s90
    %p99 = scmp.eq.s32.totalorder %s16, 0
    %p100 = por %p98, %p99
    %p101 = scmp.ne.s32.totalorder %s89, %s90
    %p102 = scmp.eq.s32.totalorder %s17, 1
    %p103 = por %p101, %p102
    %p105 = scmp.ne.s32.totalorder %s90, %s104
    %p106 = scmp.eq.s32.totalorder %s17, 0
    %p107 = por %p105, %p106
    %s109 = sadd.s32 %s108, 1
    %p112 = scmp.eq.s32.totalorder %s11, 1
    %p113 = scmp.ne.s32.totalorder %s108, %s110
    %p114 = scmp.eq.s32.totalorder %s11, 0
    %p115 = por %p113, %p114
    %p116 = scmp.ne.s32.totalorder %s108, %s110
    %p117 = scmp.eq.s32.totalorder %s16, 1
    %p118 = por %p116, %p117
    %p119 = scmp.ne.s32.totalorder %s110, %s111
    %p120 = scmp.eq.s32.totalorder %s16, 0
    %p121 = por %p119, %p120
    %p122 = scmp.ne.s32.totalorder %s110, %s111
    %p123 = scmp.eq.s32.totalorder %s17, 1
    %p124 = por %p122, %p123
    %p126 = scmp.ne.s32.totalorder %s111, %s125
    %p127 = scmp.eq.s32.totalorder %s17, 0
    %p128 = por %p126, %p127
    %s129 = ssub.s32 %s11, %s18
    %p130 = scmp.eq.s32.totalorder %s129, 0
    %s132 = sadd.s32 %s131, 1
    %s133 = scalar_select %p130, %s131, %s132
    %p136 = pneg %p130
    %p137 = scmp.eq.s32.totalorder %s11, 1
    %p138 = por %p136, %p137
    %p139 = scmp.ne.s32.totalorder %s131, %s134
    %p140 = scmp.eq.s32.totalorder %s11, 0
    %p141 = por %p139, %p140
    %p142 = scmp.ne.s32.totalorder %s131, %s134
    %p143 = scmp.eq.s32.totalorder %s16, 1
    %p144 = por %p142, %p143
    %p145 = scmp.ne.s32.totalorder %s134, %s135
    %p146 = scmp.eq.s32.totalorder %s16, 0
    %p147 = por %p145, %p146
    %p148 = scmp.ne.s32.totalorder %s134, %s135
    %p149 = scmp.eq.s32.totalorder %s17, 1
    %p150 = por %p148, %p149
    %p152 = scmp.ne.s32.totalorder %s135, %s151
    %p153 = scmp.eq.s32.totalorder %s17, 0
    %p154 = por %p152, %p153
    %p155 = scmp.le.s32.totalorder 1, %s11
    %p156 = scmp.lt.s32.totalorder %s11, 3
    %p157 = pnand %p155, %p156
    %p158 = pneg %p157
    // Predicated region
    $region9: #{rnn_forward.1} parent=5 // pred_check
      _
    $region10: #{rnn_forward.1} parent=5 // pred_check_branch
      %160 = sbr.rel (%p157) target = $region12
    $region11: #{rnn_forward.1} parent=5 // pred_region
      %s161 = ssub.s32 %s11, 1
      // Predicated region
      $region13: #{rnn_forward.1} parent=11 // pred_check
        %p162 = pneg %p58
      $region14: #{rnn_forward.1} parent=11 // pred_check_branch
        %164 = sbr.rel (%p162) target = $region16
      $region15: #{rnn_forward.1} parent=11 // pred_region
        _
      $region16: #{rnn_forward.1} parent=11 // pred_fallthru
        _
      // Predicated region
      $region17: #{rnn_forward.1} parent=11 // pred_check
        %p165 = pneg %p79
      $region18: #{rnn_forward.1} parent=11 // pred_check_branch
        %167 = sbr.rel (%p165) target = $region20
      $region19: #{rnn_forward.1} parent=11 // pred_region
        _
      $region20: #{rnn_forward.1} parent=11 // pred_fallthru
        _
      // Predicated region
      $region21: #{rnn_forward.1} parent=11 // pred_check
        %p168 = pneg %p100
      $region22: #{rnn_forward.1} parent=11 // pred_check_branch
        %170 = sbr.rel (%p168) target = $region24
      $region23: #{rnn_forward.1} parent=11 // pred_region
        _
      $region24: #{rnn_forward.1} parent=11 // pred_fallthru
        _
      // Predicated region
      $region25: #{rnn_forward.1} parent=11 // pred_check
        %p171 = pneg %p121
      $region26: #{rnn_forward.1} parent=11 // pred_check_branch
        %173 = sbr.rel (%p171) target = $region28
      $region27: #{rnn_forward.1} parent=11 // pred_region
        _
      $region28: #{rnn_forward.1} parent=11 // pred_fallthru
        _
    $region12: #{rnn_forward.1} parent=5 // pred_fallthru
      _
    %p174 = scmp.lt.s32.totalorder %s11, 2
    // Predicated region
    $region29: #{rnn_forward.1} parent=5 // pred_check
      %p175 = pneg %p174
    $region30: #{rnn_forward.1} parent=5 // pred_check_branch
      %177 = sbr.rel (%p175) target = $region32
    $region31: #{rnn_forward.1} parent=5 // pred_region
      // Predicated region
      $region33: #{rnn_forward.1} parent=31 // pred_check
        %p178 = pneg %p31
      $region34: #{rnn_forward.1} parent=31 // pred_check_branch
        %180 = sbr.rel (%p178) target = $region36
      $region35: #{rnn_forward.1} parent=31 // pred_region
        %s181 = smul.u32 2, %s11
        %p182 = scmp.lt.s32.totalorder %s181, 3
        %s183 = scalar_select %p182, %s181, 3
        %s184 = smul.addr %s183, 8
        %s185 = scalar_lea.vmem %s0, %s184
        %s186 = smul.u32 2, %s11
      $region36: #{rnn_forward.1} parent=31 // pred_fallthru
        _
    $region32: #{rnn_forward.1} parent=5 // pred_fallthru
      _
    %p187 = scmp.le.s32.totalorder 1, %s11
    %p188 = scmp.lt.s32.totalorder %s11, 3
    %p189 = pnand %p187, %p188
    %p190 = pneg %p189
    // Predicated region
    $region37: #{rnn_forward.1} parent=5 // pred_check
      _
    $region38: #{rnn_forward.1} parent=5 // pred_check_branch
      %192 = sbr.rel (%p189) target = $region40
    $region39: #{rnn_forward.1} parent=5 // pred_region
      %s193 = ssub.s32 %s11, 1
      %s194 = smul.u32 2, %s16
      %p195 = scmp.lt.s32.totalorder %s194, 3
      %s196 = scalar_select %p195, %s194, 3
      %s197 = smul.addr %s196, 8
      %s198 = scalar_lea.vmem %s0, %s197
      %p199 = pneg %p37
      %p200 = pneg %p34
      %p201 = pneg %p58
      %p202 = pneg %p55
      %p203 = pneg %p79
      %p204 = pneg %p76
      %p205 = pneg %p100
      %p206 = pneg %p97
      %p207 = pneg %p121
      %p208 = pneg %p118
      %p209 = pneg %p147
      %p210 = pneg %p144
      %s211 = smul.u32 2, %s16
      %p212 = scmp.lt.s32.totalorder %s211, 3
      %s213 = scalar_select %p212, %s211, 3
      %s214 = smul.addr %s213, 8
      %s215 = scalar_lea.vmem %s5, %s214
      %s216 = smul.u32 2, %s16
      %p217 = scmp.lt.s32.totalorder %s216, 3
      %s218 = scalar_select %p217, %s216, 3
      %s219 = smul.addr %s218, 8
      %s220 = scalar_lea.vmem %s0, %s219
      %s221 = smul.u32 2, %s16
      %s222 = smul.u32 2, %s16
      %p223 = scmp.lt.s32.totalorder %s222, 3
      %s224 = scalar_select %p223, %s222, 3
      %s225 = smul.addr %s224, 8
      %s226 = scalar_lea.vmem %s5, %s225
      %s227 = smul.u32 2, %s16
      %v228 = vld [vmem:[%s220] sm:$0xff]
      %v229 = vld [vmem:[%s220 + $0x8] sm:$0xff]
      %v230 = vld [vmem:[%s1] sm:$0xff]
      %v231 = vld [vmem:[%s1 + $0x8] sm:$0xff]
      %v232 = vld [vmem:[%s2] sm:$0x1]
      %v234 = vperm.slane %v232, 0
      %vm236 = vcmask 130048
      %v238 = vsel %vm236, %v228, 0
      %v241 = vsel %vm236, %v229, 0
      %243 = vmatpush.msra.mxu0 0.0
      %244 = vmatpush.msra.mxu0 0.0
      %245 = vmatpush.msra.mxu0 0.0
      %246 = vmatpush.msra.mxu0 0.0
      %247 = vmatpush.msra.mxu0 0.0
      %248 = vmatpush.msra.mxu0 0.0
      %249 = vmatpush.msra.mxu0 0.0
      %250 = vmatpush.msra.mxu0 0.0
      %251 = vmatpush.msra.mxu0 0.0
      %252 = vmatpush.msra.mxu0 0.0
      %253 = vmatpush.msra.mxu0 0.0
      %254 = vmatpush.msra.mxu0 0.0
      %255 = vmatpush.msra.mxu0 0.0
      %256 = vmatpush.msra.mxu0 0.0
      %257 = vmatpush.msra.mxu0 %v231
      %258 = vmatpush.msra.mxu0 %v230
      %259 = vmatmul.f32.gmra.mxu0 %v238
      %v260 = vpop.f32.mrf.mxu0
      %v261 = vadd.f32 %v234, %v260
      %262 = vmatmul.f32.gmra.mxu0 %v241
      %v263 = vpop.f32.mrf.mxu0
      %v264 = vadd.f32 %v234, %v263
      %265 = vdwg.mxu0
      %v266 = vtanh.pop %v261
      %v267 = vtanh.pop %v264
      %v268 = vld [vmem:[%s3] sm:$0xff]
      %v269 = vld [vmem:[%s3 + $0x8] sm:$0xff]
      %v270 = vld [vmem:[%s3 + $0x10] sm:$0xff]
      %v271 = vld [vmem:[%s3 + $0x18] sm:$0xff]
      %v272 = vld [vmem:[%s3 + $0x20] sm:$0xff]
      %v273 = vld [vmem:[%s3 + $0x28] sm:$0xff]
      %v274 = vld [vmem:[%s3 + $0x30] sm:$0xff]
      %v275 = vld [vmem:[%s3 + $0x38] sm:$0xff]
      %v276 = vld [vmem:[%s3 + $0x40] sm:$0xff]
      %v277 = vld [vmem:[%s3 + $0x48] sm:$0xff]
      %v278 = vld [vmem:[%s3 + $0x50] sm:$0xff]
      %v279 = vld [vmem:[%s3 + $0x58] sm:$0xff]
      %v280 = vld [vmem:[%s3 + $0x60] sm:$0xff]
      %v281 = vld [vmem:[%s3 + $0x68] sm:$0xff]
      %v282 = vld [vmem:[%s3 + $0x70] sm:$0xff]
      %v283 = vld [vmem:[%s3 + $0x78] sm:$0xff]
      %v284 = vld [vmem:[%s4] sm:$0x1]
      %v286 = vperm.slane %v284, 0
      %288 = vmatpush.msra.mxu0 %v283
      %289 = vmatpush.msra.mxu0 %v282
      %290 = vmatpush.msra.mxu0 %v281
      %291 = vmatpush.msra.mxu0 %v280
      %292 = vmatpush.msra.mxu0 %v279
      %293 = vmatpush.msra.mxu0 %v278
      %294 = vmatpush.msra.mxu0 %v277
      %295 = vmatpush.msra.mxu0 %v276
      %296 = vmatpush.msra.mxu0 %v275
      %297 = vmatpush.msra.mxu0 %v274
      %298 = vmatpush.msra.mxu0 %v273
      %299 = vmatpush.msra.mxu0 %v272
      %300 = vmatpush.msra.mxu0 %v271
      %301 = vmatpush.msra.mxu0 %v270
      %302 = vmatpush.msra.mxu0 %v269
      %303 = vmatpush.msra.mxu0 %v268
      %304 = vmatmul.f32.gmra.mxu0 %v266
      %v305 = vpop.f32.mrf.mxu0
      %v306 = vadd.f32 %v286, %v305
      %307 = vmatmul.f32.gmra.mxu0 %v267
      %v308 = vpop.f32.mrf.mxu0
      %v309 = vadd.f32 %v286, %v308
      %310 = vdwg.mxu0
      %v311 = vtanh.pop %v306
      %v312 = vtanh.pop %v309
      %313 = vst [vmem:[%s226] sm:$0xff] %v311
      %314 = vst [vmem:[%s226 + $0x8] sm:$0xff] %v312
      %s315 = smul.u32 2, %s16
      %p316 = scmp.lt.s32.totalorder %s315, 3
      %s317 = scalar_select %p316, %s315, 3
      %s318 = smul.addr %s317, 8
      %s319 = scalar_lea.vmem %s5, %s318
      // Predicated region
      $region41: #{rnn_forward.1} parent=39 // pred_check
        %p320 = pneg %p144
      $region42: #{rnn_forward.1} parent=39 // pred_check_branch
        %322 = sbr.rel (%p320) target = $region44
      $region43: #{rnn_forward.1} parent=39 // pred_region
        %s323 = smul.u32 2, %s16
      $region44: #{rnn_forward.1} parent=39 // pred_fallthru
        _
    $region40: #{rnn_forward.1} parent=5 // pred_fallthru
      _
    %p324 = scmp.le.s32.totalorder 2, %s11
    // Predicated region
    $region45: #{rnn_forward.1} parent=5 // pred_check
      %p325 = pneg %p324
    $region46: #{rnn_forward.1} parent=5 // pred_check_branch
      %327 = sbr.rel (%p325) target = $region48
    $region47: #{rnn_forward.1} parent=5 // pred_region
      %s328 = ssub.s32 %s11, 2
      // Predicated region
      $region49: #{rnn_forward.1} parent=47 // pred_check
        %p329 = pneg %p150
      $region50: #{rnn_forward.1} parent=47 // pred_check_branch
        %331 = sbr.rel (%p329) target = $region52
      $region51: #{rnn_forward.1} parent=47 // pred_region
        %s332 = smul.u32 2, %s17
        %p333 = scmp.lt.s32.totalorder %s332, 3
        %s334 = scalar_select %p333, %s332, 3
        %s335 = smul.addr %s334, 8
        %s336 = scalar_lea.vmem %s5, %s335
      $region52: #{rnn_forward.1} parent=47 // pred_fallthru
        _
    $region48: #{rnn_forward.1} parent=5 // pred_fallthru
      _
  $region6: #{rnn_forward.1} parent=0 // loop_footer
    %s15 = sadd.s32 1, %s11
  $region7: #{rnn_forward.1} parent=0 // loop_footer_branch
    %10 = sbr.rel target = $region3
  $region8: #{rnn_forward.1} parent=0 // loop_exit
    _

// kernel: rnn_forward.1
$region0: #{rnn_forward.1}
  #allocation0 [shape = 'u32[]', space=smem, size = 0x4, offset = 0x4, fixed_abs, tag = 'smem constant byte address 0x4 - core index']
  #allocation1 [shape = 'u32[72,128]{1,0:T(1,128)}', space=vmem, size = 0x9000, scoped, tag = 'internal scratch']
  %s0 = inlined_call_operand.vmem [shape: f32[32,16], index: 0, kind: input, shape index: {}]
  %s1 = inlined_call_operand.vmem [shape: f32[16,128], index: 1, kind: input, shape index: {}]
  %s2 = inlined_call_operand.vmem [shape: f32[1,128], index: 2, kind: input, shape index: {}]
  %s3 = inlined_call_operand.vmem [shape: f32[1,128,128], index: 3, kind: input, shape index: {}]
  %s4 = inlined_call_operand.vmem [shape: f32[1,1,128], index: 4, kind: input, shape index: {}]
  %s5 = inlined_call_operand.vmem [shape: f32[32,128], index: 5, kind: output, shape index: {}]
  %s6 = sld [smem:[#allocation0]]
  $region53: #{rnn_forward.1} parent=0
    _
  %s8 = ssub.s32 1, %s6
  %s9 = scalar_select 0, %s8, %s6
  loop: start=0, step=1, limit=4
  $region2: #{rnn_forward.1} parent=0 // loop_pre_header
    _
  $region3: #{rnn_forward.1} parent=0 // loop_header
    %s11 = sphi 0, %s15
    %p12 = scmp.ge.s32.totalorder %s11, 4
    %s21 = sphi 0, %s23
    %s24 = sphi 0, %s21
    %s25 = sphi 0, %s24
    %s41 = sphi 0, %s25
    %s45 = sphi 0, %s45
    %s47 = sphi 0, %s45
    %s48 = sphi 0, %s47
    %s62 = sphi 0, %s48
    %s66 = sphi 0, %s66
    %s68 = sphi 0, %s66
    %s69 = sphi 0, %s68
    %s83 = sphi 0, %s69
    %s87 = sphi 0, %s87
    %s89 = sphi 0, %s87
    %s90 = sphi 0, %s89
    %s104 = sphi 0, %s90
    %s108 = sphi 0, %s108
    %s110 = sphi 0, %s108
    %s111 = sphi 0, %s110
    %s125 = sphi 0, %s111
    %s131 = sphi 0, %s133
    %s134 = sphi 0, %s131
    %s135 = sphi 0, %s134
    %s151 = sphi 0, %s135
  $region4: #{rnn_forward.1} parent=0 // loop_header_branch
    %14 = sbr.rel (%p12) target = $region8
  $region5: #{rnn_forward.1} parent=0 // loop_body
    %s16 = ssub.s32 %s11, 1
    %s17 = ssub.s32 %s11, 2
    %s18 = sadd.s32 %s11, 1
    %s19 = ssub.s32 %s11, %s18
    %p20 = scmp.eq.s32.totalorder %s19, 0
    %s22 = sadd.s32 %s21, 1
    %s23 = scalar_select %p20, %s21, %s22
    %p26 = pneg %p20
    %p27 = scmp.eq.s32.totalorder %s11, 1
    %p28 = por %p26, %p27
    %p29 = scmp.ne.s32.totalorder %s21, %s24
    %p30 = scmp.eq.s32.totalorder %s11, 0
    %p31 = por %p29, %p30
    %p32 = scmp.ne.s32.totalorder %s21, %s24
    %p33 = scmp.eq.s32.totalorder %s16, 1
    %p34 = por %p32, %p33
    %p35 = scmp.ne.s32.totalorder %s24, %s25
    %p36 = scmp.eq.s32.totalorder %s16, 0
    %p37 = por %p35, %p36
    %p38 = scmp.ne.s32.totalorder %s24, %s25
    %p39 = scmp.eq.s32.totalorder %s17, 1
    %p40 = por %p38, %p39
    %p42 = scmp.ne.s32.totalorder %s25, %s41
    %p43 = scmp.eq.s32.totalorder %s17, 0
    %p44 = por %p42, %p43
    %s46 = sadd.s32 %s45, 1
    %p49 = scmp.eq.s32.totalorder %s11, 1
    %p50 = scmp.ne.s32.totalorder %s45, %s47
    %p51 = scmp.eq.s32.totalorder %s11, 0
    %p52 = por %p50, %p51
    %p53 = scmp.ne.s32.totalorder %s45, %s47
    %p54 = scmp.eq.s32.totalorder %s16, 1
    %p55 = por %p53, %p54
    %p56 = scmp.ne.s32.totalorder %s47, %s48
    %p57 = scmp.eq.s32.totalorder %s16, 0
    %p58 = por %p56, %p57
    %p59 = scmp.ne.s32.totalorder %s47, %s48
    %p60 = scmp.eq.s32.totalorder %s17, 1
    %p61 = por %p59, %p60
    %p63 = scmp.ne.s32.totalorder %s48, %s62
    %p64 = scmp.eq.s32.totalorder %s17, 0
    %p65 = por %p63, %p64
    %s67 = sadd.s32 %s66, 1
    %p70 = scmp.eq.s32.totalorder %s11, 1
    %p71 = scmp.ne.s32.totalorder %s66, %s68
    %p72 = scmp.eq.s32.totalorder %s11, 0
    %p73 = por %p71, %p72
    %p74 = scmp.ne.s32.totalorder %s66, %s68
    %p75 = scmp.eq.s32.totalorder %s16, 1
    %p76 = por %p74, %p75
    %p77 = scmp.ne.s32.totalorder %s68, %s69
    %p78 = scmp.eq.s32.totalorder %s16, 0
    %p79 = por %p77, %p78
    %p80 = scmp.ne.s32.totalorder %s68, %s69
    %p81 = scmp.eq.s32.totalorder %s17, 1
    %p82 = por %p80, %p81
    %p84 = scmp.ne.s32.totalorder %s69, %s83
    %p85 = scmp.eq.s32.totalorder %s17, 0
    %p86 = por %p84, %p85
    %s88 = sadd.s32 %s87, 1
    %p91 = scmp.eq.s32.totalorder %s11, 1
    %p92 = scmp.ne.s32.totalorder %s87, %s89
    %p93 = scmp.eq.s32.totalorder %s11, 0
    %p94 = por %p92, %p93
    %p95 = scmp.ne.s32.totalorder %s87, %s89
    %p96 = scmp.eq.s32.totalorder %s16, 1
    %p97 = por %p95, %p96
    %p98 = scmp.ne.s32.totalorder %s89, %s90
    %p99 = scmp.eq.s32.totalorder %s16, 0
    %p100 = por %p98, %p99
    %p101 = scmp.ne.s32.totalorder %s89, %s90
    %p102 = scmp.eq.s32.totalorder %s17, 1
    %p103 = por %p101, %p102
    %p105 = scmp.ne.s32.totalorder %s90, %s104
    %p106 = scmp.eq.s32.totalorder %s17, 0
    %p107 = por %p105, %p106
    %s109 = sadd.s32 %s108, 1
    %p112 = scmp.eq.s32.totalorder %s11, 1
    %p113 = scmp.ne.s32.totalorder %s108, %s110
    %p114 = scmp.eq.s32.totalorder %s11, 0
    %p115 = por %p113, %p114
    %p116 = scmp.ne.s32.totalorder %s108, %s110
    %p117 = scmp.eq.s32.totalorder %s16, 1
    %p118 = por %p116, %p117
    %p119 = scmp.ne.s32.totalorder %s110, %s111
    %p120 = scmp.eq.s32.totalorder %s16, 0
    %p121 = por %p119, %p120
    %p122 = scmp.ne.s32.totalorder %s110, %s111
    %p123 = scmp.eq.s32.totalorder %s17, 1
    %p124 = por %p122, %p123
    %p126 = scmp.ne.s32.totalorder %s111, %s125
    %p127 = scmp.eq.s32.totalorder %s17, 0
    %p128 = por %p126, %p127
    %s129 = ssub.s32 %s11, %s18
    %p130 = scmp.eq.s32.totalorder %s129, 0
    %s132 = sadd.s32 %s131, 1
    %s133 = scalar_select %p130, %s131, %s132
    %p136 = pneg %p130
    %p137 = scmp.eq.s32.totalorder %s11, 1
    %p138 = por %p136, %p137
    %p139 = scmp.ne.s32.totalorder %s131, %s134
    %p140 = scmp.eq.s32.totalorder %s11, 0
    %p141 = por %p139, %p140
    %p142 = scmp.ne.s32.totalorder %s131, %s134
    %p143 = scmp.eq.s32.totalorder %s16, 1
    %p144 = por %p142, %p143
    %p145 = scmp.ne.s32.totalorder %s134, %s135
    %p146 = scmp.eq.s32.totalorder %s16, 0
    %p147 = por %p145, %p146
    %p148 = scmp.ne.s32.totalorder %s134, %s135
    %p149 = scmp.eq.s32.totalorder %s17, 1
    %p150 = por %p148, %p149
    %p152 = scmp.ne.s32.totalorder %s135, %s151
    %p153 = scmp.eq.s32.totalorder %s17, 0
    %p154 = por %p152, %p153
    %p155 = scmp.le.s32.totalorder 1, %s11
    %p156 = scmp.lt.s32.totalorder %s11, 3
    %p157 = pnand %p155, %p156
    %p158 = pneg %p157
    // Predicated region
    $region9: #{rnn_forward.1} parent=5 // pred_check
      _
    $region10: #{rnn_forward.1} parent=5 // pred_check_branch
      %160 = sbr.rel (%p157) target = $region12
    $region11: #{rnn_forward.1} parent=5 // pred_region
      %s161 = ssub.s32 %s11, 1
      // Predicated region
      $region13: #{rnn_forward.1} parent=11 // pred_check
        %p162 = pneg %p58
      $region14: #{rnn_forward.1} parent=11 // pred_check_branch
        %164 = sbr.rel (%p162) target = $region16
      $region15: #{rnn_forward.1} parent=11 // pred_region
        _
      $region16: #{rnn_forward.1} parent=11 // pred_fallthru
        _
      // Predicated region
      $region17: #{rnn_forward.1} parent=11 // pred_check
        %p165 = pneg %p79
      $region18: #{rnn_forward.1} parent=11 // pred_check_branch
        %167 = sbr.rel (%p165) target = $region20
      $region19: #{rnn_forward.1} parent=11 // pred_region
        _
      $region20: #{rnn_forward.1} parent=11 // pred_fallthru
        _
      // Predicated region
      $region21: #{rnn_forward.1} parent=11 // pred_check
        %p168 = pneg %p100
      $region22: #{rnn_forward.1} parent=11 // pred_check_branch
        %170 = sbr.rel (%p168) target = $region24
      $region23: #{rnn_forward.1} parent=11 // pred_region
        _
      $region24: #{rnn_forward.1} parent=11 // pred_fallthru
        _
      // Predicated region
      $region25: #{rnn_forward.1} parent=11 // pred_check
        %p171 = pneg %p121
      $region26: #{rnn_forward.1} parent=11 // pred_check_branch
        %173 = sbr.rel (%p171) target = $region28
      $region27: #{rnn_forward.1} parent=11 // pred_region
        _
      $region28: #{rnn_forward.1} parent=11 // pred_fallthru
        _
    $region12: #{rnn_forward.1} parent=5 // pred_fallthru
      _
    %p174 = scmp.lt.s32.totalorder %s11, 2
    // Predicated region
    $region29: #{rnn_forward.1} parent=5 // pred_check
      %p175 = pneg %p174
    $region30: #{rnn_forward.1} parent=5 // pred_check_branch
      %177 = sbr.rel (%p175) target = $region32
    $region31: #{rnn_forward.1} parent=5 // pred_region
      // Predicated region
      $region33: #{rnn_forward.1} parent=31 // pred_check
        %p178 = pneg %p31
      $region34: #{rnn_forward.1} parent=31 // pred_check_branch
        %180 = sbr.rel (%p178) target = $region36
      $region35: #{rnn_forward.1} parent=31 // pred_region
        %s181 = smul.u32 2, %s11
        %p182 = scmp.lt.s32.totalorder %s181, 3
        %s183 = scalar_select %p182, %s181, 3
        %s184 = smul.addr %s183, 8
        %s185 = scalar_lea.vmem %s0, %s184
        %s186 = smul.u32 2, %s11
      $region36: #{rnn_forward.1} parent=31 // pred_fallthru
        _
    $region32: #{rnn_forward.1} parent=5 // pred_fallthru
      _
    %p187 = scmp.le.s32.totalorder 1, %s11
    %p188 = scmp.lt.s32.totalorder %s11, 3
    %p189 = pnand %p187, %p188
    %p190 = pneg %p189
    // Predicated region
    $region37: #{rnn_forward.1} parent=5 // pred_check
      _
    $region38: #{rnn_forward.1} parent=5 // pred_check_branch
      %192 = sbr.rel (%p189) target = $region40
    $region39: #{rnn_forward.1} parent=5 // pred_region
      %s193 = ssub.s32 %s11, 1
      %s194 = smul.u32 2, %s16
      %p195 = scmp.lt.s32.totalorder %s194, 3
      %s196 = scalar_select %p195, %s194, 3
      %s197 = smul.addr %s196, 8
      %s198 = scalar_lea.vmem %s0, %s197
      %p199 = pneg %p37
      %p200 = pneg %p34
      %p201 = pneg %p58
      %p202 = pneg %p55
      %p203 = pneg %p79
      %p204 = pneg %p76
      %p205 = pneg %p100
      %p206 = pneg %p97
      %p207 = pneg %p121
      %p208 = pneg %p118
      %p209 = pneg %p147
      %p210 = pneg %p144
      %s211 = smul.u32 2, %s16
      %p212 = scmp.lt.s32.totalorder %s211, 3
      %s213 = scalar_select %p212, %s211, 3
      %s214 = smul.addr %s213, 8
      %s215 = scalar_lea.vmem %s5, %s214
      %s216 = smul.u32 2, %s16
      %p217 = scmp.lt.s32.totalorder %s216, 3
      %s218 = scalar_select %p217, %s216, 3
      %s219 = smul.addr %s218, 8
      %s220 = scalar_lea.vmem %s0, %s219
      %s221 = smul.u32 2, %s16
      %s222 = smul.u32 2, %s16
      %p223 = scmp.lt.s32.totalorder %s222, 3
      %s224 = scalar_select %p223, %s222, 3
      %s225 = smul.addr %s224, 8
      %s226 = scalar_lea.vmem %s5, %s225
      %s227 = smul.u32 2, %s16
      %v228 = vld [vmem:[%s220] sm:$0xff]
      %v229 = vld [vmem:[%s220 + $0x8] sm:$0xff]
      %v230 = vld [vmem:[%s1] sm:$0xff]
      %v231 = vld [vmem:[%s1 + $0x8] sm:$0xff]
      %v232 = vld [vmem:[%s2] sm:$0x1]
      %v234 = vperm.slane %v232, 0
      %vm236 = vcmask 130048
      %v238 = vsel %vm236, %v228, 0
      %v241 = vsel %vm236, %v229, 0
      %243 = vmatpush.msra.mxu0 0.0
      %244 = vmatpush.msra.mxu0 0.0
      %245 = vmatpush.msra.mxu0 0.0
      %246 = vmatpush.msra.mxu0 0.0
      %247 = vmatpush.msra.mxu0 0.0
      %248 = vmatpush.msra.mxu0 0.0
      %249 = vmatpush.msra.mxu0 0.0
      %250 = vmatpush.msra.mxu0 0.0
      %251 = vmatpush.msra.mxu0 0.0
      %252 = vmatpush.msra.mxu0 0.0
      %253 = vmatpush.msra.mxu0 0.0
      %254 = vmatpush.msra.mxu0 0.0
      %255 = vmatpush.msra.mxu0 0.0
      %256 = vmatpush.msra.mxu0 0.0
      %257 = vmatpush.msra.mxu0 %v231
      %258 = vmatpush.msra.mxu0 %v230
      %259 = vmatmul.f32.gmra.mxu0 %v238
      %v260 = vpop.f32.mrf.mxu0
      %v261 = vadd.f32 %v234, %v260
      %262 = vmatmul.f32.gmra.mxu0 %v241
      %v263 = vpop.f32.mrf.mxu0
      %v264 = vadd.f32 %v234, %v263
      %265 = vdwg.mxu0
      %v266 = vtanh.pop %v261
      %v267 = vtanh.pop %v264
      %v268 = vld [vmem:[%s3] sm:$0xff]
      %v269 = vld [vmem:[%s3 + $0x8] sm:$0xff]
      %v270 = vld [vmem:[%s3 + $0x10] sm:$0xff]
      %v271 = vld [vmem:[%s3 + $0x18] sm:$0xff]
      %v272 = vld [vmem:[%s3 + $0x20] sm:$0xff]
      %v273 = vld [vmem:[%s3 + $0x28] sm:$0xff]
      %v274 = vld [vmem:[%s3 + $0x30] sm:$0xff]
      %v275 = vld [vmem:[%s3 + $0x38] sm:$0xff]
      %v276 = vld [vmem:[%s3 + $0x40] sm:$0xff]
      %v277 = vld [vmem:[%s3 + $0x48] sm:$0xff]
      %v278 = vld [vmem:[%s3 + $0x50] sm:$0xff]
      %v279 = vld [vmem:[%s3 + $0x58] sm:$0xff]
      %v280 = vld [vmem:[%s3 + $0x60] sm:$0xff]
      %v281 = vld [vmem:[%s3 + $0x68] sm:$0xff]
      %v282 = vld [vmem:[%s3 + $0x70] sm:$0xff]
      %v283 = vld [vmem:[%s3 + $0x78] sm:$0xff]
      %v284 = vld [vmem:[%s4] sm:$0x1]
      %v286 = vperm.slane %v284, 0
      %288 = vmatpush.msra.mxu0 %v283
      %289 = vmatpush.msra.mxu0 %v282
      %290 = vmatpush.msra.mxu0 %v281
      %291 = vmatpush.msra.mxu0 %v280
      %292 = vmatpush.msra.mxu0 %v279
      %293 = vmatpush.msra.mxu0 %v278
      %294 = vmatpush.msra.mxu0 %v277
      %295 = vmatpush.msra.mxu0 %v276
      %296 = vmatpush.msra.mxu0 %v275
      %297 = vmatpush.msra.mxu0 %v274
      %298 = vmatpush.msra.mxu0 %v273
      %299 = vmatpush.msra.mxu0 %v272
      %300 = vmatpush.msra.mxu0 %v271
      %301 = vmatpush.msra.mxu0 %v270
      %302 = vmatpush.msra.mxu0 %v269
      %303 = vmatpush.msra.mxu0 %v268
      %304 = vmatmul.f32.gmra.mxu0 %v266
      %v305 = vpop.f32.mrf.mxu0
      %v306 = vadd.f32 %v286, %v305
      %307 = vmatmul.f32.gmra.mxu0 %v267
      %v308 = vpop.f32.mrf.mxu0
      %v309 = vadd.f32 %v286, %v308
      %310 = vdwg.mxu0
      %v311 = vtanh.pop %v306
      %v312 = vtanh.pop %v309
      %313 = vst [vmem:[%s226] sm:$0xff] %v311
      %314 = vst [vmem:[%s226 + $0x8] sm:$0xff] %v312
      %s315 = smul.u32 2, %s16
      %p316 = scmp.lt.s32.totalorder %s315, 3
      %s317 = scalar_select %p316, %s315, 3
      %s318 = smul.addr %s317, 8
      %s319 = scalar_lea.vmem %s5, %s318
      // Predicated region
      $region41: #{rnn_forward.1} parent=39 // pred_check
        %p320 = pneg %p144
      $region42: #{rnn_forward.1} parent=39 // pred_check_branch
        %322 = sbr.rel (%p320) target = $region44
      $region43: #{rnn_forward.1} parent=39 // pred_region
        %s323 = smul.u32 2, %s16
      $region44: #{rnn_forward.1} parent=39 // pred_fallthru
        _
    $region40: #{rnn_forward.1} parent=5 // pred_fallthru
      _
    %p324 = scmp.le.s32.totalorder 2, %s11
    // Predicated region
    $region45: #{rnn_forward.1} parent=5 // pred_check
      %p325 = pneg %p324
    $region46: #{rnn_forward.1} parent=5 // pred_check_branch
      %327 = sbr.rel (%p325) target = $region48
    $region47: #{rnn_forward.1} parent=5 // pred_region
      %s328 = ssub.s32 %s11, 2
      // Predicated region
      $region49: #{rnn_forward.1} parent=47 // pred_check
        %p329 = pneg %p150
      $region50: #{rnn_forward.1} parent=47 // pred_check_branch
        %331 = sbr.rel (%p329) target = $region52
      $region51: #{rnn_forward.1} parent=47 // pred_region
        %s332 = smul.u32 2, %s17
        %p333 = scmp.lt.s32.totalorder %s332, 3
        %s334 = scalar_select %p333, %s332, 3
        %s335 = smul.addr %s334, 8
        %s336 = scalar_lea.vmem %s5, %s335
      $region52: #{rnn_forward.1} parent=47 // pred_fallthru
        _
    $region48: #{rnn_forward.1} parent=5 // pred_fallthru
      _
  $region6: #{rnn_forward.1} parent=0 // loop_footer
    %s15 = sadd.s32 1, %s11
  $region7: #{rnn_forward.1} parent=0 // loop_footer_branch
    %10 = sbr.rel target = $region3
  $region8: #{rnn_forward.1} parent=0 // loop_exit
    _

</llo_original>
